<compile_context>
chip_gen: v7x
topology: tpu7x:2x2x1
jax: 0.10.0
libtpu: 0.0.40
codegen_flags: <defaults>
</compile_context>

<pallas_src>
import functools

import jax
import jax.numpy as jnp
from jax import lax
from jax.experimental import pallas as pl
from jax.experimental.pallas import tpu as pltpu

LANE = 128


def _round_up(x, m):
    return ((x + m - 1) // m) * m


# --------------------------------------------------------------------------------------
# Phase 1: hoisted input projection + time recurrence (sequential, runs once)
# --------------------------------------------------------------------------------------
def _recurrence_kernel(x_ref, wih_t_ref, whh_t_ref, bias_ref, h_all_ref,
                       xproj, h, *, seq_len, bs):
    # Hoisted input projection for ALL timesteps as a single (seq*bs, F) x (F, H) matmul,
    # with the two RNN biases pre-summed and folded in.
    xproj[...] = (
        jnp.dot(x_ref[...], wih_t_ref[...], preferred_element_type=jnp.float32)
        + bias_ref[...]
    )

    # Zero initial hidden state (matches RNN.init_hidden on the first call).
    h[...] = jnp.zeros_like(h)

    # Sequential recurrence: per step only h @ W_hh^T + X_proj[t] and tanh.
    # fori_loop(unroll=True) keeps W_hh / h visible to the scheduler instead of
    # paying ~0.35 us of grid-step pipeline overhead per timestep.
    def step(t, carry):
        off = pl.multiple_of(t * bs, bs)
        pre = xproj[pl.ds(off, bs), :] + jnp.dot(
            h[...], whh_t_ref[...], preferred_element_type=jnp.float32)
        h_new = jnp.tanh(pre)
        h[...] = h_new
        h_all_ref[pl.ds(off, bs), :] = h_new
        return carry

    lax.fori_loop(0, seq_len, step, 0, unroll=True)


# --------------------------------------------------------------------------------------
# Phase 2: output projection + log_softmax (embarrassingly parallel over rows)
# --------------------------------------------------------------------------------------
def _project_logsoftmax_kernel(h_ref, wout_t_ref, bout_ref, out_ref, *, vocab):
    logits = jnp.dot(h_ref[...], wout_t_ref[...],
                     preferred_element_type=jnp.float32) + bout_ref[...]
    v_pad = logits.shape[-1]
    if vocab < v_pad:
        # Mask padded vocab lanes so they don't corrupt the softmax normalizer.
        lane = lax.broadcasted_iota(jnp.int32, logits.shape, dimension=1)
        logits = jnp.where(lane < vocab, logits, -1e30)
    m = jnp.max(logits, axis=-1, keepdims=True)
    shifted = logits - m
    lse = jnp.log(jnp.sum(jnp.exp(shifted), axis=-1, keepdims=True))
    out_ref[...] = shifted - lse


# --------------------------------------------------------------------------------------
# Wrapper
# --------------------------------------------------------------------------------------
def rnn_forward(batch_ids, params):
    """batch_ids: (seq_len, batch) int32. Returns (seq_len*batch, vocab) log-probs."""
    emb_table, w_ih, w_hh, b_ih, b_hh, w_out, b_out = params
    seq_len, bs = batch_ids.shape
    n_factors = emb_table.shape[1]
    n_hidden = w_ih.shape[0]
    vocab = w_out.shape[0]

    H = _round_up(n_hidden, LANE)     # lane-dense hidden width
    V = _round_up(vocab, LANE)        # lane-dense vocab width
    M = seq_len * bs                  # total rows

    # ---- glue: embedding gather + weight pre-transpose / zero-padding ----
    # TODO(synk): the embedding gather is data-dependent; done as jnp.take glue rather
    # than an in-kernel DMA gather.
    x = jnp.take(emb_table, batch_ids, axis=0).reshape(M, n_factors)

    w_ih_t = jnp.zeros((n_factors, H), jnp.float32).at[:, :n_hidden].set(w_ih.T)
    w_hh_t = jnp.zeros((H, H), jnp.float32).at[:n_hidden, :n_hidden].set(w_hh.T)
    bias = jnp.zeros((1, H), jnp.float32).at[0, :n_hidden].set(b_ih + b_hh)
    w_out_t = jnp.zeros((H, V), jnp.float32).at[:n_hidden, :vocab].set(w_out.T)
    b_out_p = jnp.zeros((1, V), jnp.float32).at[0, :vocab].set(b_out)

    # ---- Phase 1: recurrence (single grid step; whole sequence resident in VMEM) ----
    # TODO(synk): for long sequences / large batch, tile the time axis into multi-step
    # blocks instead of keeping all of X_proj / H resident (v7x has only 64 MiB VMEM).
    rec = functools.partial(_recurrence_kernel, seq_len=seq_len, bs=bs)
    h_all = pl.pallas_call(
        rec,
        out_shape=jax.ShapeDtypeStruct((M, H), jnp.float32),
        grid_spec=pltpu.PrefetchScalarGridSpec(
            num_scalar_prefetch=0,
            grid=(1,),
            in_specs=[
                pl.BlockSpec((M, n_factors), lambda i: (0, 0)),   # all embeddings at once
                pl.BlockSpec((n_factors, H), lambda i: (0, 0)),
                pl.BlockSpec((H, H), lambda i: (0, 0)),
                pl.BlockSpec((1, H), lambda i: (0, 0)),
            ],
            out_specs=pl.BlockSpec((M, H), lambda i: (0, 0)),
            scratch_shapes=[
                pltpu.VMEM((M, H), jnp.float32),    # X_proj for all timesteps
                pltpu.VMEM((bs, H), jnp.float32),   # hidden state
            ],
        ),
        compiler_params=pltpu.CompilerParams(
            dimension_semantics=("arbitrary",),     # recurrence -> sequential
        ),
    )(x, w_ih_t, w_hh_t, bias)

    # ---- Phase 2: batched projection + log_softmax, parallel row tiles ----
    TM = min(M, 256)
    M_pad = _round_up(M, TM)
    if M_pad != M:
        h_all = jnp.pad(h_all, ((0, M_pad - M), (0, 0)))

    proj = functools.partial(_project_logsoftmax_kernel, vocab=vocab)
    logp = pl.pallas_call(
        proj,
        out_shape=jax.ShapeDtypeStruct((M_pad, V), jnp.float32),
        grid_spec=pltpu.PrefetchScalarGridSpec(
            num_scalar_prefetch=0,
            grid=(M_pad // TM,),
            in_specs=[
                pl.BlockSpec((TM, H), lambda i: (i, 0)),
                pl.BlockSpec((H, V), lambda i: (0, 0)),
                pl.BlockSpec((1, V), lambda i: (0, 0)),
            ],
            out_specs=pl.BlockSpec((TM, V), lambda i: (i, 0)),
        ),
        compiler_params=pltpu.CompilerParams(
            dimension_semantics=("parallel",),      # independent rows -> megacore-splittable
        ),
    )(h_all, w_out_t, b_out_p)

    return logp[:M, :vocab]


# --------------------------------------------------------------------------------------
# Pure-JAX reference mirroring the PyTorch forward
# --------------------------------------------------------------------------------------
def reference_forward(batch_ids, params):
    emb_table, w_ih, w_hh, b_ih, b_hh, w_out, b_out = params
    seq_len, bs = batch_ids.shape
    n_hidden = w_ih.shape[0]
    emb = jnp.take(emb_table, batch_ids, axis=0)
    h = jnp.zeros((bs, n_hidden), jnp.float32)
    outs = []
    for t in range(seq_len):
        h = jnp.tanh(emb[t] @ w_ih.T + b_ih + h @ w_hh.T + b_hh)
        outs.append(h)
    rnn_out = jnp.stack(outs, axis=0)
    logits = rnn_out @ w_out.T + b_out
    logp = jax.nn.log_softmax(logits, axis=-1)
    return logp.reshape(-1, w_out.shape[0])


def init_params(key, vocab_size, n_factors, n_hidden):
    ks = jax.random.split(key, 7)
    stdv = 1.0 / jnp.sqrt(n_hidden)
    emb_table = jax.random.normal(ks[0], (vocab_size, n_factors), jnp.float32)
    w_ih = jax.random.uniform(ks[1], (n_hidden, n_factors), jnp.float32, -stdv, stdv)
    w_hh = jax.random.uniform(ks[2], (n_hidden, n_hidden), jnp.float32, -stdv, stdv)
    b_ih = jax.random.uniform(ks[3], (n_hidden,), jnp.float32, -stdv, stdv)
    b_hh = jax.random.uniform(ks[4], (n_hidden,), jnp.float32, -stdv, stdv)
    w_out = jax.random.uniform(ks[5], (vocab_size, n_hidden), jnp.float32, -stdv, stdv)
    b_out = jax.random.uniform(ks[6], (vocab_size,), jnp.float32, -stdv, stdv)
    return (emb_table, w_ih, w_hh, b_ih, b_hh, w_out, b_out)


if __name__ == "__main__":
    vocab_size, n_factors, n_hidden = 32, 16, 32
    seq_len, batch_size = 8, 8

    key = jax.random.PRNGKey(0)
    k_par, k_ids = jax.random.split(key)
    params = init_params(k_par, vocab_size, n_factors, n_hidden)

    # (seq_len, batch) token ids, as nn.RNN expects (batch_first=False)
    batch_ids = jax.random.randint(k_ids, (seq_len, batch_size), 0, vocab_size, jnp.int32)

    # NOTE: nn.RNN dropout only applies between stacked layers; with n_recurrent=1 it is
    # a no-op, so the forward here is exact.
    out = rnn_forward(batch_ids, params)
    out = jax.block_until_ready(out)

    ref = reference_forward(batch_ids, params)
    assert out.shape == (seq_len * batch_size, vocab_size)
    assert jnp.allclose(out, ref, atol=1e-4, rtol=1e-4), "mismatch vs reference"

    print("KERNEL_OK")
</pallas_src>

<mosaic_0001>
module attributes {stable_mosaic.version = 11 : i64} {
  func.func @_recurrence_kernel(%arg0: i32, %arg1: memref<64x16xf32, #tpu.memory_space<vmem>>, %arg2: memref<16x128xf32, #tpu.memory_space<vmem>>, %arg3: memref<128x128xf32, #tpu.memory_space<vmem>>, %arg4: memref<1x128xf32, #tpu.memory_space<vmem>>, %arg5: memref<64x128xf32, #tpu.memory_space<vmem>>, %arg6: memref<64x128xf32, #tpu.memory_space<vmem>>, %arg7: memref<8x128xf32, #tpu.memory_space<vmem>>) attributes {dimension_semantics = [#tpu.dimension_semantics<arbitrary>], iteration_bounds = array<i64: 1>, scalar_prefetch = 0 : i64, scratch_operands = 2 : i64, tpu.core_type = #tpu.core_type<tc>, window_params = [{pipeline_mode = #tpu.pipeline_mode<synchronous>, transform_indices = @transform_0, window_bounds = array<i64: 64, 16>}, {pipeline_mode = #tpu.pipeline_mode<synchronous>, transform_indices = @transform_1, window_bounds = array<i64: 16, 128>}, {pipeline_mode = #tpu.pipeline_mode<synchronous>, transform_indices = @transform_2, window_bounds = array<i64: 128, 128>}, {pipeline_mode = #tpu.pipeline_mode<synchronous>, transform_indices = @transform_3, window_bounds = array<i64: 1, 128>}, {pipeline_mode = #tpu.pipeline_mode<synchronous>, transform_indices = @transform_4, window_bounds = array<i64: 64, 128>}]} {
    %c0 = arith.constant 0 : index
    %c0_0 = arith.constant 0 : index
    %0 = vector.load %arg1[%c0, %c0_0] : memref<64x16xf32, #tpu.memory_space<vmem>>, vector<64x16xf32>
    %c0_1 = arith.constant 0 : index
    %c0_2 = arith.constant 0 : index
    %1 = vector.load %arg2[%c0_1, %c0_2] : memref<16x128xf32, #tpu.memory_space<vmem>>, vector<16x128xf32>
    %cst = arith.constant dense<0.000000e+00> : vector<64x128xf32>
    %2 = tpu.matmul %0, %1, %cst {dimension_numbers = #tpu.dot_dimension_numbers<[1], [0], [0], [1], [0, 0, 1, 1], [], []>} : vector<64x16xf32>, vector<16x128xf32>, vector<64x128xf32> -> vector<64x128xf32>
    %c0_3 = arith.constant 0 : index
    %c0_4 = arith.constant 0 : index
    %3 = vector.load %arg4[%c0_3, %c0_4] : memref<1x128xf32, #tpu.memory_space<vmem>>, vector<1x128xf32>
    %4 = vector.broadcast %3 : vector<1x128xf32> to vector<64x128xf32>
    %5 = arith.addf %2, %4 : vector<64x128xf32>
    %c0_5 = arith.constant 0 : index
    %c0_6 = arith.constant 0 : index
    %6 = vector.load %arg6[%c0_5, %c0_6] : memref<64x128xf32, #tpu.memory_space<vmem>>, vector<64x128xf32>
    tpu.vector_store %arg6[%c0_5, %c0_6], %5 {strides = array<i32>} : memref<64x128xf32, #tpu.memory_space<vmem>>, vector<64x128xf32>,
    %cst_7 = arith.constant 0.000000e+00 : f32
    %7 = vector.broadcast %cst_7 : f32 to vector<8x128xf32>
    %c0_8 = arith.constant 0 : index
    %c0_9 = arith.constant 0 : index
    %8 = vector.load %arg7[%c0_8, %c0_9] : memref<8x128xf32, #tpu.memory_space<vmem>>, vector<8x128xf32>
    tpu.vector_store %arg7[%c0_8, %c0_9], %7 {strides = array<i32>} : memref<8x128xf32, #tpu.memory_space<vmem>>, vector<8x128xf32>,
    %c0_i32 = arith.constant 0 : i32
    %c8_i32 = arith.constant 8 : i32
    %9 = arith.muli %c0_i32, %c8_i32 : i32
    %10 = tpu.assume_multiple %9, 8 : i32
    %11 = arith.index_cast %10 : i32 to index
    %c0_10 = arith.constant 0 : index
    %12 = vector.load %arg6[%11, %c0_10] : memref<64x128xf32, #tpu.memory_space<vmem>>, vector<8x128xf32>
    %c0_11 = arith.constant 0 : index
    %c0_12 = arith.constant 0 : index
    %13 = vector.load %arg7[%c0_11, %c0_12] : memref<8x128xf32, #tpu.memory_space<vmem>>, vector<8x128xf32>
    %c0_13 = arith.constant 0 : index
    %c0_14 = arith.constant 0 : index
    %14 = vector.load %arg3[%c0_13, %c0_14] : memref<128x128xf32, #tpu.memory_space<vmem>>, vector<128x128xf32>
    %cst_15 = arith.constant dense<0.000000e+00> : vector<8x128xf32>
    %15 = tpu.matmul %13, %14, %cst_15 {dimension_numbers = #tpu.dot_dimension_numbers<[1], [0], [0], [1], [0, 0, 1, 1], [], []>} : vector<8x128xf32>, vector<128x128xf32>, vector<8x128xf32> -> vector<8x128xf32>
    %16 = arith.addf %12, %15 : vector<8x128xf32>
    %17 = math.tanh %16 : vector<8x128xf32>
    %c0_16 = arith.constant 0 : index
    %c0_17 = arith.constant 0 : index
    %18 = vector.load %arg7[%c0_16, %c0_17] : memref<8x128xf32, #tpu.memory_space<vmem>>, vector<8x128xf32>
    tpu.vector_store %arg7[%c0_16, %c0_17], %17 {strides = array<i32>} : memref<8x128xf32, #tpu.memory_space<vmem>>, vector<8x128xf32>,
    %19 = arith.index_cast %10 : i32 to index
    %c0_18 = arith.constant 0 : index
    %20 = vector.load %arg5[%19, %c0_18] : memref<64x128xf32, #tpu.memory_space<vmem>>, vector<8x128xf32>
    tpu.vector_store %arg5[%19, %c0_18], %17 {strides = array<i32>} : memref<64x128xf32, #tpu.memory_space<vmem>>, vector<8x128xf32>,
    %c1_i32 = arith.constant 1 : i32
    %c8_i32_19 = arith.constant 8 : i32
    %21 = arith.muli %c1_i32, %c8_i32_19 : i32
    %22 = tpu.assume_multiple %21, 8 : i32
    %23 = arith.index_cast %22 : i32 to index
    %c0_20 = arith.constant 0 : index
    %24 = vector.load %arg6[%23, %c0_20] : memref<64x128xf32, #tpu.memory_space<vmem>>, vector<8x128xf32>
    %c0_21 = arith.constant 0 : index
    %c0_22 = arith.constant 0 : index
    %25 = vector.load %arg7[%c0_21, %c0_22] : memref<8x128xf32, #tpu.memory_space<vmem>>, vector<8x128xf32>
    %c0_23 = arith.constant 0 : index
    %c0_24 = arith.constant 0 : index
    %26 = vector.load %arg3[%c0_23, %c0_24] : memref<128x128xf32, #tpu.memory_space<vmem>>, vector<128x128xf32>
    %cst_25 = arith.constant dense<0.000000e+00> : vector<8x128xf32>
    %27 = tpu.matmul %25, %26, %cst_25 {dimension_numbers = #tpu.dot_dimension_numbers<[1], [0], [0], [1], [0, 0, 1, 1], [], []>} : vector<8x128xf32>, vector<128x128xf32>, vector<8x128xf32> -> vector<8x128xf32>
    %28 = arith.addf %24, %27 : vector<8x128xf32>
    %29 = math.tanh %28 : vector<8x128xf32>
    %c0_26 = arith.constant 0 : index
    %c0_27 = arith.constant 0 : index
    %30 = vector.load %arg7[%c0_26, %c0_27] : memref<8x128xf32, #tpu.memory_space<vmem>>, vector<8x128xf32>
    tpu.vector_store %arg7[%c0_26, %c0_27], %29 {strides = array<i32>} : memref<8x128xf32, #tpu.memory_space<vmem>>, vector<8x128xf32>,
    %31 = arith.index_cast %22 : i32 to index
    %c0_28 = arith.constant 0 : index
    %32 = vector.load %arg5[%31, %c0_28] : memref<64x128xf32, #tpu.memory_space<vmem>>, vector<8x128xf32>
    tpu.vector_store %arg5[%31, %c0_28], %29 {strides = array<i32>} : memref<64x128xf32, #tpu.memory_space<vmem>>, vector<8x128xf32>,
    %c2_i32 = arith.constant 2 : i32
    %c8_i32_29 = arith.constant 8 : i32
    %33 = arith.muli %c2_i32, %c8_i32_29 : i32
    %34 = tpu.assume_multiple %33, 8 : i32
    %35 = arith.index_cast %34 : i32 to index
    %c0_30 = arith.constant 0 : index
    %36 = vector.load %arg6[%35, %c0_30] : memref<64x128xf32, #tpu.memory_space<vmem>>, vector<8x128xf32>
    %c0_31 = arith.constant 0 : index
    %c0_32 = arith.constant 0 : index
    %37 = vector.load %arg7[%c0_31, %c0_32] : memref<8x128xf32, #tpu.memory_space<vmem>>, vector<8x128xf32>
    %c0_33 = arith.constant 0 : index
    %c0_34 = arith.constant 0 : index
    %38 = vector.load %arg3[%c0_33, %c0_34] : memref<128x128xf32, #tpu.memory_space<vmem>>, vector<128x128xf32>
    %cst_35 = arith.constant dense<0.000000e+00> : vector<8x128xf32>
    %39 = tpu.matmul %37, %38, %cst_35 {dimension_numbers = #tpu.dot_dimension_numbers<[1], [0], [0], [1], [0, 0, 1, 1], [], []>} : vector<8x128xf32>, vector<128x128xf32>, vector<8x128xf32> -> vector<8x128xf32>
    %40 = arith.addf %36, %39 : vector<8x128xf32>
    %41 = math.tanh %40 : vector<8x128xf32>
    %c0_36 = arith.constant 0 : index
    %c0_37 = arith.constant 0 : index
    %42 = vector.load %arg7[%c0_36, %c0_37] : memref<8x128xf32, #tpu.memory_space<vmem>>, vector<8x128xf32>
    tpu.vector_store %arg7[%c0_36, %c0_37], %41 {strides = array<i32>} : memref<8x128xf32, #tpu.memory_space<vmem>>, vector<8x128xf32>,
    %43 = arith.index_cast %34 : i32 to index
    %c0_38 = arith.constant 0 : index
    %44 = vector.load %arg5[%43, %c0_38] : memref<64x128xf32, #tpu.memory_space<vmem>>, vector<8x128xf32>
    tpu.vector_store %arg5[%43, %c0_38], %41 {strides = array<i32>} : memref<64x128xf32, #tpu.memory_space<vmem>>, vector<8x128xf32>,
    %c3_i32 = arith.constant 3 : i32
    %c8_i32_39 = arith.constant 8 : i32
    %45 = arith.muli %c3_i32, %c8_i32_39 : i32
    %46 = tpu.assume_multiple %45, 8 : i32
    %47 = arith.index_cast %46 : i32 to index
    %c0_40 = arith.constant 0 : index
    %48 = vector.load %arg6[%47, %c0_40] : memref<64x128xf32, #tpu.memory_space<vmem>>, vector<8x128xf32>
    %c0_41 = arith.constant 0 : index
    %c0_42 = arith.constant 0 : index
    %49 = vector.load %arg7[%c0_41, %c0_42] : memref<8x128xf32, #tpu.memory_space<vmem>>, vector<8x128xf32>
    %c0_43 = arith.constant 0 : index
    %c0_44 = arith.constant 0 : index
    %50 = vector.load %arg3[%c0_43, %c0_44] : memref<128x128xf32, #tpu.memory_space<vmem>>, vector<128x128xf32>
    %cst_45 = arith.constant dense<0.000000e+00> : vector<8x128xf32>
    %51 = tpu.matmul %49, %50, %cst_45 {dimension_numbers = #tpu.dot_dimension_numbers<[1], [0], [0], [1], [0, 0, 1, 1], [], []>} : vector<8x128xf32>, vector<128x128xf32>, vector<8x128xf32> -> vector<8x128xf32>
    %52 = arith.addf %48, %51 : vector<8x128xf32>
    %53 = math.tanh %52 : vector<8x128xf32>
    %c0_46 = arith.constant 0 : index
    %c0_47 = arith.constant 0 : index
    %54 = vector.load %arg7[%c0_46, %c0_47] : memref<8x128xf32, #tpu.memory_space<vmem>>, vector<8x128xf32>
    tpu.vector_store %arg7[%c0_46, %c0_47], %53 {strides = array<i32>} : memref<8x128xf32, #tpu.memory_space<vmem>>, vector<8x128xf32>,
    %55 = arith.index_cast %46 : i32 to index
    %c0_48 = arith.constant 0 : index
    %56 = vector.load %arg5[%55, %c0_48] : memref<64x128xf32, #tpu.memory_space<vmem>>, vector<8x128xf32>
    tpu.vector_store %arg5[%55, %c0_48], %53 {strides = array<i32>} : memref<64x128xf32, #tpu.memory_space<vmem>>, vector<8x128xf32>,
    %c4_i32 = arith.constant 4 : i32
    %c8_i32_49 = arith.constant 8 : i32
    %57 = arith.muli %c4_i32, %c8_i32_49 : i32
    %58 = tpu.assume_multiple %57, 8 : i32
    %59 = arith.index_cast %58 : i32 to index
    %c0_50 = arith.constant 0 : index
    %60 = vector.load %arg6[%59, %c0_50] : memref<64x128xf32, #tpu.memory_space<vmem>>, vector<8x128xf32>
    %c0_51 = arith.constant 0 : index
    %c0_52 = arith.constant 0 : index
    %61 = vector.load %arg7[%c0_51, %c0_52] : memref<8x128xf32, #tpu.memory_space<vmem>>, vector<8x128xf32>
    %c0_53 = arith.constant 0 : index
    %c0_54 = arith.constant 0 : index
    %62 = vector.load %arg3[%c0_53, %c0_54] : memref<128x128xf32, #tpu.memory_space<vmem>>, vector<128x128xf32>
    %cst_55 = arith.constant dense<0.000000e+00> : vector<8x128xf32>
    %63 = tpu.matmul %61, %62, %cst_55 {dimension_numbers = #tpu.dot_dimension_numbers<[1], [0], [0], [1], [0, 0, 1, 1], [], []>} : vector<8x128xf32>, vector<128x128xf32>, vector<8x128xf32> -> vector<8x128xf32>
    %64 = arith.addf %60, %63 : vector<8x128xf32>
    %65 = math.tanh %64 : vector<8x128xf32>
    %c0_56 = arith.constant 0 : index
    %c0_57 = arith.constant 0 : index
    %66 = vector.load %arg7[%c0_56, %c0_57] : memref<8x128xf32, #tpu.memory_space<vmem>>, vector<8x128xf32>
    tpu.vector_store %arg7[%c0_56, %c0_57], %65 {strides = array<i32>} : memref<8x128xf32, #tpu.memory_space<vmem>>, vector<8x128xf32>,
    %67 = arith.index_cast %58 : i32 to index
    %c0_58 = arith.constant 0 : index
    %68 = vector.load %arg5[%67, %c0_58] : memref<64x128xf32, #tpu.memory_space<vmem>>, vector<8x128xf32>
    tpu.vector_store %arg5[%67, %c0_58], %65 {strides = array<i32>} : memref<64x128xf32, #tpu.memory_space<vmem>>, vector<8x128xf32>,
    %c5_i32 = arith.constant 5 : i32
    %c8_i32_59 = arith.constant 8 : i32
    %69 = arith.muli %c5_i32, %c8_i32_59 : i32
    %70 = tpu.assume_multiple %69, 8 : i32
    %71 = arith.index_cast %70 : i32 to index
    %c0_60 = arith.constant 0 : index
    %72 = vector.load %arg6[%71, %c0_60] : memref<64x128xf32, #tpu.memory_space<vmem>>, vector<8x128xf32>
    %c0_61 = arith.constant 0 : index
    %c0_62 = arith.constant 0 : index
    %73 = vector.load %arg7[%c0_61, %c0_62] : memref<8x128xf32, #tpu.memory_space<vmem>>, vector<8x128xf32>
    %c0_63 = arith.constant 0 : index
    %c0_64 = arith.constant 0 : index
    %74 = vector.load %arg3[%c0_63, %c0_64] : memref<128x128xf32, #tpu.memory_space<vmem>>, vector<128x128xf32>
    %cst_65 = arith.constant dense<0.000000e+00> : vector<8x128xf32>
    %75 = tpu.matmul %73, %74, %cst_65 {dimension_numbers = #tpu.dot_dimension_numbers<[1], [0], [0], [1], [0, 0, 1, 1], [], []>} : vector<8x128xf32>, vector<128x128xf32>, vector<8x128xf32> -> vector<8x128xf32>
    %76 = arith.addf %72, %75 : vector<8x128xf32>
    %77 = math.tanh %76 : vector<8x128xf32>
    %c0_66 = arith.constant 0 : index
    %c0_67 = arith.constant 0 : index
    %78 = vector.load %arg7[%c0_66, %c0_67] : memref<8x128xf32, #tpu.memory_space<vmem>>, vector<8x128xf32>
    tpu.vector_store %arg7[%c0_66, %c0_67], %77 {strides = array<i32>} : memref<8x128xf32, #tpu.memory_space<vmem>>, vector<8x128xf32>,
    %79 = arith.index_cast %70 : i32 to index
    %c0_68 = arith.constant 0 : index
    %80 = vector.load %arg5[%79, %c0_68] : memref<64x128xf32, #tpu.memory_space<vmem>>, vector<8x128xf32>
    tpu.vector_store %arg5[%79, %c0_68], %77 {strides = array<i32>} : memref<64x128xf32, #tpu.memory_space<vmem>>, vector<8x128xf32>,
    %c6_i32 = arith.constant 6 : i32
    %c8_i32_69 = arith.constant 8 : i32
    %81 = arith.muli %c6_i32, %c8_i32_69 : i32
    %82 = tpu.assume_multiple %81, 8 : i32
    %83 = arith.index_cast %82 : i32 to index
    %c0_70 = arith.constant 0 : index
    %84 = vector.load %arg6[%83, %c0_70] : memref<64x128xf32, #tpu.memory_space<vmem>>, vector<8x128xf32>
    %c0_71 = arith.constant 0 : index
    %c0_72 = arith.constant 0 : index
    %85 = vector.load %arg7[%c0_71, %c0_72] : memref<8x128xf32, #tpu.memory_space<vmem>>, vector<8x128xf32>
    %c0_73 = arith.constant 0 : index
    %c0_74 = arith.constant 0 : index
    %86 = vector.load %arg3[%c0_73, %c0_74] : memref<128x128xf32, #tpu.memory_space<vmem>>, vector<128x128xf32>
    %cst_75 = arith.constant dense<0.000000e+00> : vector<8x128xf32>
    %87 = tpu.matmul %85, %86, %cst_75 {dimension_numbers = #tpu.dot_dimension_numbers<[1], [0], [0], [1], [0, 0, 1, 1], [], []>} : vector<8x128xf32>, vector<128x128xf32>, vector<8x128xf32> -> vector<8x128xf32>
    %88 = arith.addf %84, %87 : vector<8x128xf32>
    %89 = math.tanh %88 : vector<8x128xf32>
    %c0_76 = arith.constant 0 : index
    %c0_77 = arith.constant 0 : index
    %90 = vector.load %arg7[%c0_76, %c0_77] : memref<8x128xf32, #tpu.memory_space<vmem>>, vector<8x128xf32>
    tpu.vector_store %arg7[%c0_76, %c0_77], %89 {strides = array<i32>} : memref<8x128xf32, #tpu.memory_space<vmem>>, vector<8x128xf32>,
    %91 = arith.index_cast %82 : i32 to index
    %c0_78 = arith.constant 0 : index
    %92 = vector.load %arg5[%91, %c0_78] : memref<64x128xf32, #tpu.memory_space<vmem>>, vector<8x128xf32>
    tpu.vector_store %arg5[%91, %c0_78], %89 {strides = array<i32>} : memref<64x128xf32, #tpu.memory_space<vmem>>, vector<8x128xf32>,
    %c7_i32 = arith.constant 7 : i32
    %c8_i32_79 = arith.constant 8 : i32
    %93 = arith.muli %c7_i32, %c8_i32_79 : i32
    %94 = tpu.assume_multiple %93, 8 : i32
    %95 = arith.index_cast %94 : i32 to index
    %c0_80 = arith.constant 0 : index
    %96 = vector.load %arg6[%95, %c0_80] : memref<64x128xf32, #tpu.memory_space<vmem>>, vector<8x128xf32>
    %c0_81 = arith.constant 0 : index
    %c0_82 = arith.constant 0 : index
    %97 = vector.load %arg7[%c0_81, %c0_82] : memref<8x128xf32, #tpu.memory_space<vmem>>, vector<8x128xf32>
    %c0_83 = arith.constant 0 : index
    %c0_84 = arith.constant 0 : index
    %98 = vector.load %arg3[%c0_83, %c0_84] : memref<128x128xf32, #tpu.memory_space<vmem>>, vector<128x128xf32>
    %cst_85 = arith.constant dense<0.000000e+00> : vector<8x128xf32>
    %99 = tpu.matmul %97, %98, %cst_85 {dimension_numbers = #tpu.dot_dimension_numbers<[1], [0], [0], [1], [0, 0, 1, 1], [], []>} : vector<8x128xf32>, vector<128x128xf32>, vector<8x128xf32> -> vector<8x128xf32>
    %100 = arith.addf %96, %99 : vector<8x128xf32>
    %101 = math.tanh %100 : vector<8x128xf32>
    %c0_86 = arith.constant 0 : index
    %c0_87 = arith.constant 0 : index
    %102 = vector.load %arg7[%c0_86, %c0_87] : memref<8x128xf32, #tpu.memory_space<vmem>>, vector<8x128xf32>
    tpu.vector_store %arg7[%c0_86, %c0_87], %101 {strides = array<i32>} : memref<8x128xf32, #tpu.memory_space<vmem>>, vector<8x128xf32>,
    %103 = arith.index_cast %94 : i32 to index
    %c0_88 = arith.constant 0 : index
    %104 = vector.load %arg5[%103, %c0_88] : memref<64x128xf32, #tpu.memory_space<vmem>>, vector<8x128xf32>
    tpu.vector_store %arg5[%103, %c0_88], %101 {strides = array<i32>} : memref<64x128xf32, #tpu.memory_space<vmem>>, vector<8x128xf32>,
    %c8_i32_89 = arith.constant 8 : i32
    return
  }
  func.func @transform_0(%arg0: i32) -> (i32, i32) {
    %c0_i32 = arith.constant 0 : i32
    %c0_i32_0 = arith.constant 0 : i32
    %c0_i32_1 = arith.constant 0 : i32
    return %c0_i32, %c0_i32_0 : i32, i32
  }
  func.func @transform_1(%arg0: i32) -> (i32, i32) {
    %c0_i32 = arith.constant 0 : i32
    %c0_i32_0 = arith.constant 0 : i32
    %c0_i32_1 = arith.constant 0 : i32
    return %c0_i32, %c0_i32_0 : i32, i32
  }
  func.func @transform_2(%arg0: i32) -> (i32, i32) {
    %c0_i32 = arith.constant 0 : i32
    %c0_i32_0 = arith.constant 0 : i32
    %c0_i32_1 = arith.constant 0 : i32
    return %c0_i32, %c0_i32_0 : i32, i32
  }
  func.func @transform_3(%arg0: i32) -> (i32, i32) {
    %c0_i32 = arith.constant 0 : i32
    %c0_i32_0 = arith.constant 0 : i32
    %c0_i32_1 = arith.constant 0 : i32
    return %c0_i32, %c0_i32_0 : i32, i32
  }
  func.func @transform_4(%arg0: i32) -> (i32, i32) {
    %c0_i32 = arith.constant 0 : i32
    %c0_i32_0 = arith.constant 0 : i32
    %c0_i32_1 = arith.constant 0 : i32
    return %c0_i32, %c0_i32_0 : i32, i32
  }
}

</mosaic_0001>

<llo_original>
// kernel: tpu_custom_call.1
$region0: #{tpu_custom_call.1}
  #allocation0 [shape = 'u32[]', space=smem, size = 0x4, offset = 0x4, fixed_abs, tag = 'smem constant byte address 0x4 - core index']
  #allocation1 [shape = 'u32[144,128]{1,0:T(1,128)}', space=vmem, size = 0x12000, scoped, tag = 'internal scratch']
  #allocation2 [shape = 'f32[64,128]{1,0:T(8,128)}', space=vmem, size = 0x8000, scoped, tag = 'scratch operand']
  #allocation3 [shape = 'f32[8,128]{1,0:T(8,128)}', space=vmem, size = 0x1000, scoped, tag = 'scratch operand']
  %s0 = inlined_call_operand.vmem [shape: f32[64,16], index: 0, kind: input, shape index: {}]
  %s1 = inlined_call_operand.vmem [shape: f32[16,128], index: 1, kind: input, shape index: {}]
  %s2 = inlined_call_operand.hbm [shape: f32[128,128], index: 2, kind: input, shape index: {}]
  %s3 = inlined_call_operand.vmem [shape: f32[1,128], index: 3, kind: input, shape index: {}]
  %s4 = inlined_call_operand.hbm [shape: f32[64,128], index: 4, kind: output, shape index: {}]
  %s5 = sld [smem:[#allocation0]]
  $region30: #{tpu_custom_call.1} parent=0
    _
  %s7 = ssub.s32 1, %s5
  %s8 = scalar_select 0, %s7, %s5
  $region1: #{tpu_custom_call.1} parent=0
    #allocation4 [shape = 'u8[65536]{0}', space=vmem, size = 0x10000, scoped, tag = 'input window, operand 2, single buffered']
    #allocation5 [shape = 's32[1]{0}', space=sflag, size = 0x4, scoped, tag = 'scoped memory for tpu_custom_call.1']
    #allocation6 [shape = 's32[1]{0}', space=sflag, size = 0x4, scoped, tag = 'scoped memory for tpu_custom_call.1']
    #allocation7 [shape = 'u8[32768]{0}', space=vmem, size = 0x8000, scoped, tag = 'output window, operand 0, single buffered']
    %9 = vsyncpa [#allocation5], 0
    %10 = vsyncpa [#allocation6], 0
    // Predicated region
    $region2: #{tpu_custom_call.1} parent=1 // pred_check
      _
    $region3: #{tpu_custom_call.1} parent=1 // pred_check_branch
      %12 = sbr.rel (0) target = $region5
    $region4: #{tpu_custom_call.1} parent=1 // pred_region
      _
    $region5: #{tpu_custom_call.1} parent=1 // pred_fallthru
      _
    // Predicated region
    $region6: #{tpu_custom_call.1} parent=1 // pred_check
      _
    $region7: #{tpu_custom_call.1} parent=1 // pred_check_branch
      %14 = sbr.rel (0) target = $region9
    $region8: #{tpu_custom_call.1} parent=1 // pred_region
      _
    $region9: #{tpu_custom_call.1} parent=1 // pred_fallthru
      _
    // Predicated region
    $region10: #{tpu_custom_call.1} parent=1 // pred_check
      _
    $region11: #{tpu_custom_call.1} parent=1 // pred_check_branch
      %16 = sbr.rel (0) target = $region13
    $region12: #{tpu_custom_call.1} parent=1 // pred_region
      %s18 = ssub.s32 2048, 2048
      %19 = vsyncadd [#allocation5], %s18
      %s20 = sshll.u32 [#allocation4], 4
      %s21 = int_to_ptr.vmem [resolvable:$true] %s20
      %26 = dma.hbm_to_vmem [thread:$0]  %s2, 2048, %s21, [#allocation5], 128, 128, 8
    $region13: #{tpu_custom_call.1} parent=1 // pred_fallthru
      _
    // Predicated region
    $region14: #{tpu_custom_call.1} parent=1 // pred_check
      _
    $region15: #{tpu_custom_call.1} parent=1 // pred_check_branch
      %28 = sbr.rel (0) target = $region17
    $region16: #{tpu_custom_call.1} parent=1 // pred_region
      _
    $region17: #{tpu_custom_call.1} parent=1 // pred_fallthru
      _
    // Predicated region
    $region18: #{tpu_custom_call.1} parent=1 // pred_check
      _
    $region19: #{tpu_custom_call.1} parent=1 // pred_check_branch
      %30 = sbr.rel (0) target = $region21
    $region20: #{tpu_custom_call.1} parent=1 // pred_region
      %31 = dma.done [#allocation5], 2048
    $region21: #{tpu_custom_call.1} parent=1 // pred_fallthru
      _
    %v32 = vld [vmem:[%s0] sm:$0xff]
    %v33 = vld [vmem:[%s0 + $0x8] sm:$0xff]
    %v34 = vld [vmem:[%s0 + $0x10] sm:$0xff]
    %v35 = vld [vmem:[%s0 + $0x18] sm:$0xff]
    %v36 = vld [vmem:[%s0 + $0x20] sm:$0xff]
    %v37 = vld [vmem:[%s0 + $0x28] sm:$0xff]
    %v38 = vld [vmem:[%s0 + $0x30] sm:$0xff]
    %v39 = vld [vmem:[%s0 + $0x38] sm:$0xff]
    %v40 = vld [vmem:[%s1] sm:$0xff]
    %v41 = vld [vmem:[%s1 + $0x8] sm:$0xff]
    %v42 = vld [vmem:[%s3] sm:$0x1]
    %v44 = vlaneseq
    %v45 = vshrl.u32 %v44, 7
    %v46 = vsub.s32 0, %v45
    %v47 = vrot.slane %v42, %v46
    %vm49 = vcmask 130048
    %v51 = vsel %vm49, %v32, 0
    %v54 = vsel %vm49, %v33, 0
    %v57 = vsel %vm49, %v34, 0
    %v60 = vsel %vm49, %v35, 0
    %v63 = vsel %vm49, %v36, 0
    %v66 = vsel %vm49, %v37, 0
    %v69 = vsel %vm49, %v38, 0
    %v72 = vsel %vm49, %v39, 0
    %74 = vmatprep.subr.mxu0 0.0
    %75 = vmatpush1.msra.mxu0 %v40
    %76 = vmatprep.subr.mxu0 0.0
    %77 = vmatpush1.msra.mxu0 %v41
    %78 = vmatprep.subr.mxu0 0.0
    %79 = vmatpush1.msra.mxu0 0.0
    %80 = vmatprep.subr.mxu0 0.0
    %81 = vmatpush1.msra.mxu0 0.0
    %82 = vmatprep.subr.mxu0 0.0
    %83 = vmatpush1.msra.mxu0 0.0
    %84 = vmatprep.subr.mxu0 0.0
    %85 = vmatpush1.msra.mxu0 0.0
    %86 = vmatprep.subr.mxu0 0.0
    %87 = vmatpush1.msra.mxu0 0.0
    %88 = vmatprep.subr.mxu0 0.0
    %89 = vmatpush1.msra.mxu0 0.0
    %90 = vmatprep.subr.mxu0 0.0
    %91 = vmatpush1.msra.mxu0 0.0
    %92 = vmatprep.subr.mxu0 0.0
    %93 = vmatpush1.msra.mxu0 0.0
    %94 = vmatprep.subr.mxu0 0.0
    %95 = vmatpush1.msra.mxu0 0.0
    %96 = vmatprep.subr.mxu0 0.0
    %97 = vmatpush1.msra.mxu0 0.0
    %98 = vmatprep.subr.mxu0 0.0
    %99 = vmatpush1.msra.mxu0 0.0
    %100 = vmatprep.subr.mxu0 0.0
    %101 = vmatpush1.msra.mxu0 0.0
    %102 = vmatprep.subr.mxu0 0.0
    %103 = vmatpush1.msra.mxu0 0.0
    %104 = vmatprep.subr.mxu0 0.0
    %105 = vmatpush1.msra.mxu0 0.0
    %106 = vmatprep.subr.mxu0 0.0
    %107 = vmatpush1.msra.mxu0 0.0
    %108 = vmatprep.subr.mxu0 0.0
    %109 = vmatpush1.msra.mxu0 0.0
    %110 = vmatprep.subr.mxu0 0.0
    %111 = vmatpush1.msra.mxu0 0.0
    %112 = vmatprep.subr.mxu0 0.0
    %113 = vmatpush1.msra.mxu0 0.0
    %114 = vmatprep.subr.mxu0 0.0
    %115 = vmatpush1.msra.mxu0 0.0
    %116 = vmatprep.subr.mxu0 0.0
    %117 = vmatpush1.msra.mxu0 0.0
    %118 = vmatprep.subr.mxu0 0.0
    %119 = vmatpush1.msra.mxu0 0.0
    %120 = vmatprep.subr.mxu0 0.0
    %121 = vmatpush1.msra.mxu0 0.0
    %122 = vmatprep.subr.mxu0 0.0
    %123 = vmatpush1.msra.mxu0 0.0
    %124 = vmatprep.subr.mxu0 0.0
    %125 = vmatpush1.msra.mxu0 0.0
    %126 = vmatprep.subr.mxu0 0.0
    %127 = vmatpush1.msra.mxu0 0.0
    %128 = vmatprep.subr.mxu0 0.0
    %129 = vmatpush1.msra.mxu0 0.0
    %130 = vmatprep.subr.mxu0 0.0
    %131 = vmatpush1.msra.mxu0 0.0
    %132 = vmatprep.subr.mxu0 0.0
    %133 = vmatpush1.msra.mxu0 0.0
    %134 = vmatprep.subr.mxu0 0.0
    %135 = vmatpush1.msra.mxu0 0.0
    %136 = vmatprep.subr.mxu0 0.0
    %137 = vmatpush1.msra.mxu0 0.0
    %138 = vmatprep.mubr.f32.mxu0 0.0
    %139 = vmatmul.mubr.f32.gmra.mrb[0].mxu0 %v51
    %v140 = vpop.f32.mrb[0].mxu0
    %v141 = vadd.f32 %v47, %v140
    %v142 = vpop.f32.mrb[0].mxu0
    %143 = vmatprep.mubr.f32.mxu0 0.0
    %144 = vmatmul.mubr.f32.gmra.mrb[0].mxu0 %v54
    %v145 = vpop.f32.mrb[0].mxu0
    %v146 = vadd.f32 %v47, %v145
    %v147 = vpop.f32.mrb[0].mxu0
    %148 = vmatprep.mubr.f32.mxu0 0.0
    %149 = vmatmul.mubr.f32.gmra.mrb[0].mxu0 %v57
    %v150 = vpop.f32.mrb[0].mxu0
    %v151 = vadd.f32 %v47, %v150
    %v152 = vpop.f32.mrb[0].mxu0
    %153 = vmatprep.mubr.f32.mxu0 0.0
    %154 = vmatmul.mubr.f32.gmra.mrb[0].mxu0 %v60
    %v155 = vpop.f32.mrb[0].mxu0
    %v156 = vadd.f32 %v47, %v155
    %v157 = vpop.f32.mrb[0].mxu0
    %158 = vmatprep.mubr.f32.mxu0 0.0
    %159 = vmatmul.mubr.f32.gmra.mrb[0].mxu0 %v63
    %v160 = vpop.f32.mrb[0].mxu0
    %v161 = vadd.f32 %v47, %v160
    %v162 = vpop.f32.mrb[0].mxu0
    %163 = vmatprep.mubr.f32.mxu0 0.0
    %164 = vmatmul.mubr.f32.gmra.mrb[0].mxu0 %v66
    %v165 = vpop.f32.mrb[0].mxu0
    %v166 = vadd.f32 %v47, %v165
    %v167 = vpop.f32.mrb[0].mxu0
    %168 = vmatprep.mubr.f32.mxu0 0.0
    %169 = vmatmul.mubr.f32.gmra.mrb[0].mxu0 %v69
    %v170 = vpop.f32.mrb[0].mxu0
    %v171 = vadd.f32 %v47, %v170
    %v172 = vpop.f32.mrb[0].mxu0
    %173 = vmatprep.mubr.f32.mxu0 0.0
    %174 = vmatmul.mubr.f32.gmra.mrb[0].mxu0 %v72
    %v175 = vpop.f32.mrb[0].mxu0
    %v176 = vadd.f32 %v47, %v175
    %v177 = vpop.f32.mrb[0].mxu0
    %178 = vdwg.mxu0
    %179 = vst [vmem:[#allocation2] sm:$0xff] %v141
    %180 = vst [vmem:[#allocation2 + $0x8] sm:$0xff] %v146
    %181 = vst [vmem:[#allocation2 + $0x10] sm:$0xff] %v151
    %182 = vst [vmem:[#allocation2 + $0x18] sm:$0xff] %v156
    %183 = vst [vmem:[#allocation2 + $0x20] sm:$0xff] %v161
    %184 = vst [vmem:[#allocation2 + $0x28] sm:$0xff] %v166
    %185 = vst [vmem:[#allocation2 + $0x30] sm:$0xff] %v171
    %186 = vst [vmem:[#allocation2 + $0x38] sm:$0xff] %v176
    %187 = vst [vmem:[#allocation3] sm:$0xff] 0.0
    %v188 = vld [vmem:[#allocation2] sm:$0xff]
    %v189 = vld [vmem:[#allocation3] sm:$0xff]
    %v190 = vld [vmem:[#allocation4] sm:$0xff]
    %v191 = vld [vmem:[#allocation4 + $0x8] sm:$0xff]
    %v192 = vld [vmem:[#allocation4 + $0x10] sm:$0xff]
    %v193 = vld [vmem:[#allocation4 + $0x18] sm:$0xff]
    %v194 = vld [vmem:[#allocation4 + $0x20] sm:$0xff]
    %v195 = vld [vmem:[#allocation4 + $0x28] sm:$0xff]
    %v196 = vld [vmem:[#allocation4 + $0x30] sm:$0xff]
    %v197 = vld [vmem:[#allocation4 + $0x38] sm:$0xff]
    %v198 = vld [vmem:[#allocation4 + $0x40] sm:$0xff]
    %v199 = vld [vmem:[#allocation4 + $0x48] sm:$0xff]
    %v200 = vld [vmem:[#allocation4 + $0x50] sm:$0xff]
    %v201 = vld [vmem:[#allocation4 + $0x58] sm:$0xff]
    %v202 = vld [vmem:[#allocation4 + $0x60] sm:$0xff]
    %v203 = vld [vmem:[#allocation4 + $0x68] sm:$0xff]
    %v204 = vld [vmem:[#allocation4 + $0x70] sm:$0xff]
    %v205 = vld [vmem:[#allocation4 + $0x78] sm:$0xff]
    %206 = vmatprep.subr.mxu0 0.0
    %207 = vmatpush1.msra.mxu0 %v190
    %208 = vmatprep.subr.mxu0 0.0
    %209 = vmatpush1.msra.mxu0 %v191
    %210 = vmatprep.subr.mxu0 0.0
    %211 = vmatpush1.msra.mxu0 %v192
    %212 = vmatprep.subr.mxu0 0.0
    %213 = vmatpush1.msra.mxu0 %v193
    %214 = vmatprep.subr.mxu0 0.0
    %215 = vmatpush1.msra.mxu0 %v194
    %216 = vmatprep.subr.mxu0 0.0
    %217 = vmatpush1.msra.mxu0 %v195
    %218 = vmatprep.subr.mxu0 0.0
    %219 = vmatpush1.msra.mxu0 %v196
    %220 = vmatprep.subr.mxu0 0.0
    %221 = vmatpush1.msra.mxu0 %v197
    %222 = vmatprep.subr.mxu0 0.0
    %223 = vmatpush1.msra.mxu0 %v198
    %224 = vmatprep.subr.mxu0 0.0
    %225 = vmatpush1.msra.mxu0 %v199
    %226 = vmatprep.subr.mxu0 0.0
    %227 = vmatpush1.msra.mxu0 %v200
    %228 = vmatprep.subr.mxu0 0.0
    %229 = vmatpush1.msra.mxu0 %v201
    %230 = vmatprep.subr.mxu0 0.0
    %231 = vmatpush1.msra.mxu0 %v202
    %232 = vmatprep.subr.mxu0 0.0
    %233 = vmatpush1.msra.mxu0 %v203
    %234 = vmatprep.subr.mxu0 0.0
    %235 = vmatpush1.msra.mxu0 %v204
    %236 = vmatprep.subr.mxu0 0.0
    %237 = vmatpush1.msra.mxu0 %v205
    %238 = vmatprep.subr.mxu0 0.0
    %239 = vmatpush1.msra.mxu0 0.0
    %240 = vmatprep.subr.mxu0 0.0
    %241 = vmatpush1.msra.mxu0 0.0
    %242 = vmatprep.subr.mxu0 0.0
    %243 = vmatpush1.msra.mxu0 0.0
    %244 = vmatprep.subr.mxu0 0.0
    %245 = vmatpush1.msra.mxu0 0.0
    %246 = vmatprep.subr.mxu0 0.0
    %247 = vmatpush1.msra.mxu0 0.0
    %248 = vmatprep.subr.mxu0 0.0
    %249 = vmatpush1.msra.mxu0 0.0
    %250 = vmatprep.subr.mxu0 0.0
    %251 = vmatpush1.msra.mxu0 0.0
    %252 = vmatprep.subr.mxu0 0.0
    %253 = vmatpush1.msra.mxu0 0.0
    %254 = vmatprep.subr.mxu0 0.0
    %255 = vmatpush1.msra.mxu0 0.0
    %256 = vmatprep.subr.mxu0 0.0
    %257 = vmatpush1.msra.mxu0 0.0
    %258 = vmatprep.subr.mxu0 0.0
    %259 = vmatpush1.msra.mxu0 0.0
    %260 = vmatprep.subr.mxu0 0.0
    %261 = vmatpush1.msra.mxu0 0.0
    %262 = vmatprep.subr.mxu0 0.0
    %263 = vmatpush1.msra.mxu0 0.0
    %264 = vmatprep.subr.mxu0 0.0
    %265 = vmatpush1.msra.mxu0 0.0
    %266 = vmatprep.subr.mxu0 0.0
    %267 = vmatpush1.msra.mxu0 0.0
    %268 = vmatprep.subr.mxu0 0.0
    %269 = vmatpush1.msra.mxu0 0.0
    %270 = vmatprep.mubr.f32.mxu0 0.0
    %271 = vmatmul.mubr.f32.gmra.mrb[0].mxu0 %v189
    %v272 = vpop.f32.mrb[0].mxu0
    %v273 = vadd.f32 0.0, %v272
    %v274 = vpop.f32.mrb[0].mxu0
    %275 = vdwg.mxu0
    %v276 = vadd.f32 %v188, %v273
    %v277 = vtanh.pop %v276
    %278 = vst [vmem:[#allocation3] sm:$0xff] %v277
    %279 = vst [vmem:[#allocation7] sm:$0xff] %v277
    %s280 = scalar_lea.vmem [#allocation2], 8
    %v281 = vld [vmem:[%s280] sm:$0xff]
    %v282 = vld [vmem:[#allocation3] sm:$0xff]
    %v283 = vld [vmem:[#allocation4] sm:$0xff]
    %v284 = vld [vmem:[#allocation4 + $0x8] sm:$0xff]
    %v285 = vld [vmem:[#allocation4 + $0x10] sm:$0xff]
    %v286 = vld [vmem:[#allocation4 + $0x18] sm:$0xff]
    %v287 = vld [vmem:[#allocation4 + $0x20] sm:$0xff]
    %v288 = vld [vmem:[#allocation4 + $0x28] sm:$0xff]
    %v289 = vld [vmem:[#allocation4 + $0x30] sm:$0xff]
    %v290 = vld [vmem:[#allocation4 + $0x38] sm:$0xff]
    %v291 = vld [vmem:[#allocation4 + $0x40] sm:$0xff]
    %v292 = vld [vmem:[#allocation4 + $0x48] sm:$0xff]
    %v293 = vld [vmem:[#allocation4 + $0x50] sm:$0xff]
    %v294 = vld [vmem:[#allocation4 + $0x58] sm:$0xff]
    %v295 = vld [vmem:[#allocation4 + $0x60] sm:$0xff]
    %v296 = vld [vmem:[#allocation4 + $0x68] sm:$0xff]
    %v297 = vld [vmem:[#allocation4 + $0x70] sm:$0xff]
    %v298 = vld [vmem:[#allocation4 + $0x78] sm:$0xff]
    %299 = vmatprep.subr.mxu0 0.0
    %300 = vmatpush1.msra.mxu0 %v283
    %301 = vmatprep.subr.mxu0 0.0
    %302 = vmatpush1.msra.mxu0 %v284
    %303 = vmatprep.subr.mxu0 0.0
    %304 = vmatpush1.msra.mxu0 %v285
    %305 = vmatprep.subr.mxu0 0.0
    %306 = vmatpush1.msra.mxu0 %v286
    %307 = vmatprep.subr.mxu0 0.0
    %308 = vmatpush1.msra.mxu0 %v287
    %309 = vmatprep.subr.mxu0 0.0
    %310 = vmatpush1.msra.mxu0 %v288
    %311 = vmatprep.subr.mxu0 0.0
    %312 = vmatpush1.msra.mxu0 %v289
    %313 = vmatprep.subr.mxu0 0.0
    %314 = vmatpush1.msra.mxu0 %v290
    %315 = vmatprep.subr.mxu0 0.0
    %316 = vmatpush1.msra.mxu0 %v291
    %317 = vmatprep.subr.mxu0 0.0
    %318 = vmatpush1.msra.mxu0 %v292
    %319 = vmatprep.subr.mxu0 0.0
    %320 = vmatpush1.msra.mxu0 %v293
    %321 = vmatprep.subr.mxu0 0.0
    %322 = vmatpush1.msra.mxu0 %v294
    %323 = vmatprep.subr.mxu0 0.0
    %324 = vmatpush1.msra.mxu0 %v295
    %325 = vmatprep.subr.mxu0 0.0
    %326 = vmatpush1.msra.mxu0 %v296
    %327 = vmatprep.subr.mxu0 0.0
    %328 = vmatpush1.msra.mxu0 %v297
    %329 = vmatprep.subr.mxu0 0.0
    %330 = vmatpush1.msra.mxu0 %v298
    %331 = vmatprep.subr.mxu0 0.0
    %332 = vmatpush1.msra.mxu0 0.0
    %333 = vmatprep.subr.mxu0 0.0
    %334 = vmatpush1.msra.mxu0 0.0
    %335 = vmatprep.subr.mxu0 0.0
    %336 = vmatpush1.msra.mxu0 0.0
    %337 = vmatprep.subr.mxu0 0.0
    %338 = vmatpush1.msra.mxu0 0.0
    %339 = vmatprep.subr.mxu0 0.0
    %340 = vmatpush1.msra.mxu0 0.0
    %341 = vmatprep.subr.mxu0 0.0
    %342 = vmatpush1.msra.mxu0 0.0
    %343 = vmatprep.subr.mxu0 0.0
    %344 = vmatpush1.msra.mxu0 0.0
    %345 = vmatprep.subr.mxu0 0.0
    %346 = vmatpush1.msra.mxu0 0.0
    %347 = vmatprep.subr.mxu0 0.0
    %348 = vmatpush1.msra.mxu0 0.0
    %349 = vmatprep.subr.mxu0 0.0
    %350 = vmatpush1.msra.mxu0 0.0
    %351 = vmatprep.subr.mxu0 0.0
    %352 = vmatpush1.msra.mxu0 0.0
    %353 = vmatprep.subr.mxu0 0.0
    %354 = vmatpush1.msra.mxu0 0.0
    %355 = vmatprep.subr.mxu0 0.0
    %356 = vmatpush1.msra.mxu0 0.0
    %357 = vmatprep.subr.mxu0 0.0
    %358 = vmatpush1.msra.mxu0 0.0
    %359 = vmatprep.subr.mxu0 0.0
    %360 = vmatpush1.msra.mxu0 0.0
    %361 = vmatprep.subr.mxu0 0.0
    %362 = vmatpush1.msra.mxu0 0.0
    %363 = vmatprep.mubr.f32.mxu0 0.0
    %364 = vmatmul.mubr.f32.gmra.mrb[0].mxu0 %v282
    %v365 = vpop.f32.mrb[0].mxu0
    %v366 = vadd.f32 0.0, %v365
    %v367 = vpop.f32.mrb[0].mxu0
    %368 = vdwg.mxu0
    %v369 = vadd.f32 %v281, %v366
    %v370 = vtanh.pop %v369
    %371 = vst [vmem:[#allocation3] sm:$0xff] %v370
    %s372 = scalar_lea.vmem [#allocation7], 8
    %373 = vst [vmem:[%s372] sm:$0xff] %v370
    %s374 = scalar_lea.vmem [#allocation2], 16
    %v375 = vld [vmem:[%s374] sm:$0xff]
    %v376 = vld [vmem:[#allocation3] sm:$0xff]
    %v377 = vld [vmem:[#allocation4] sm:$0xff]
    %v378 = vld [vmem:[#allocation4 + $0x8] sm:$0xff]
    %v379 = vld [vmem:[#allocation4 + $0x10] sm:$0xff]
    %v380 = vld [vmem:[#allocation4 + $0x18] sm:$0xff]
    %v381 = vld [vmem:[#allocation4 + $0x20] sm:$0xff]
    %v382 = vld [vmem:[#allocation4 + $0x28] sm:$0xff]
    %v383 = vld [vmem:[#allocation4 + $0x30] sm:$0xff]
    %v384 = vld [vmem:[#allocation4 + $0x38] sm:$0xff]
    %v385 = vld [vmem:[#allocation4 + $0x40] sm:$0xff]
    %v386 = vld [vmem:[#allocation4 + $0x48] sm:$0xff]
    %v387 = vld [vmem:[#allocation4 + $0x50] sm:$0xff]
    %v388 = vld [vmem:[#allocation4 + $0x58] sm:$0xff]
    %v389 = vld [vmem:[#allocation4 + $0x60] sm:$0xff]
    %v390 = vld [vmem:[#allocation4 + $0x68] sm:$0xff]
    %v391 = vld [vmem:[#allocation4 + $0x70] sm:$0xff]
    %v392 = vld [vmem:[#allocation4 + $0x78] sm:$0xff]
    %393 = vmatprep.subr.mxu0 0.0
    %394 = vmatpush1.msra.mxu0 %v377
    %395 = vmatprep.subr.mxu0 0.0
    %396 = vmatpush1.msra.mxu0 %v378
    %397 = vmatprep.subr.mxu0 0.0
    %398 = vmatpush1.msra.mxu0 %v379
    %399 = vmatprep.subr.mxu0 0.0
    %400 = vmatpush1.msra.mxu0 %v380
    %401 = vmatprep.subr.mxu0 0.0
    %402 = vmatpush1.msra.mxu0 %v381
    %403 = vmatprep.subr.mxu0 0.0
    %404 = vmatpush1.msra.mxu0 %v382
    %405 = vmatprep.subr.mxu0 0.0
    %406 = vmatpush1.msra.mxu0 %v383
    %407 = vmatprep.subr.mxu0 0.0
    %408 = vmatpush1.msra.mxu0 %v384
    %409 = vmatprep.subr.mxu0 0.0
    %410 = vmatpush1.msra.mxu0 %v385
    %411 = vmatprep.subr.mxu0 0.0
    %412 = vmatpush1.msra.mxu0 %v386
    %413 = vmatprep.subr.mxu0 0.0
    %414 = vmatpush1.msra.mxu0 %v387
    %415 = vmatprep.subr.mxu0 0.0
    %416 = vmatpush1.msra.mxu0 %v388
    %417 = vmatprep.subr.mxu0 0.0
    %418 = vmatpush1.msra.mxu0 %v389
    %419 = vmatprep.subr.mxu0 0.0
    %420 = vmatpush1.msra.mxu0 %v390
    %421 = vmatprep.subr.mxu0 0.0
    %422 = vmatpush1.msra.mxu0 %v391
    %423 = vmatprep.subr.mxu0 0.0
    %424 = vmatpush1.msra.mxu0 %v392
    %425 = vmatprep.subr.mxu0 0.0
    %426 = vmatpush1.msra.mxu0 0.0
    %427 = vmatprep.subr.mxu0 0.0
    %428 = vmatpush1.msra.mxu0 0.0
    %429 = vmatprep.subr.mxu0 0.0
    %430 = vmatpush1.msra.mxu0 0.0
    %431 = vmatprep.subr.mxu0 0.0
    %432 = vmatpush1.msra.mxu0 0.0
    %433 = vmatprep.subr.mxu0 0.0
    %434 = vmatpush1.msra.mxu0 0.0
    %435 = vmatprep.subr.mxu0 0.0
    %436 = vmatpush1.msra.mxu0 0.0
    %437 = vmatprep.subr.mxu0 0.0
    %438 = vmatpush1.msra.mxu0 0.0
    %439 = vmatprep.subr.mxu0 0.0
    %440 = vmatpush1.msra.mxu0 0.0
    %441 = vmatprep.subr.mxu0 0.0
    %442 = vmatpush1.msra.mxu0 0.0
    %443 = vmatprep.subr.mxu0 0.0
    %444 = vmatpush1.msra.mxu0 0.0
    %445 = vmatprep.subr.mxu0 0.0
    %446 = vmatpush1.msra.mxu0 0.0
    %447 = vmatprep.subr.mxu0 0.0
    %448 = vmatpush1.msra.mxu0 0.0
    %449 = vmatprep.subr.mxu0 0.0
    %450 = vmatpush1.msra.mxu0 0.0
    %451 = vmatprep.subr.mxu0 0.0
    %452 = vmatpush1.msra.mxu0 0.0
    %453 = vmatprep.subr.mxu0 0.0
    %454 = vmatpush1.msra.mxu0 0.0
    %455 = vmatprep.subr.mxu0 0.0
    %456 = vmatpush1.msra.mxu0 0.0
    %457 = vmatprep.mubr.f32.mxu0 0.0
    %458 = vmatmul.mubr.f32.gmra.mrb[0].mxu0 %v376
    %v459 = vpop.f32.mrb[0].mxu0
    %v460 = vadd.f32 0.0, %v459
    %v461 = vpop.f32.mrb[0].mxu0
    %462 = vdwg.mxu0
    %v463 = vadd.f32 %v375, %v460
    %v464 = vtanh.pop %v463
    %465 = vst [vmem:[#allocation3] sm:$0xff] %v464
    %s466 = scalar_lea.vmem [#allocation7], 16
    %467 = vst [vmem:[%s466] sm:$0xff] %v464
    %s468 = scalar_lea.vmem [#allocation2], 24
    %v469 = vld [vmem:[%s468] sm:$0xff]
    %v470 = vld [vmem:[#allocation3] sm:$0xff]
    %v471 = vld [vmem:[#allocation4] sm:$0xff]
    %v472 = vld [vmem:[#allocation4 + $0x8] sm:$0xff]
    %v473 = vld [vmem:[#allocation4 + $0x10] sm:$0xff]
    %v474 = vld [vmem:[#allocation4 + $0x18] sm:$0xff]
    %v475 = vld [vmem:[#allocation4 + $0x20] sm:$0xff]
    %v476 = vld [vmem:[#allocation4 + $0x28] sm:$0xff]
    %v477 = vld [vmem:[#allocation4 + $0x30] sm:$0xff]
    %v478 = vld [vmem:[#allocation4 + $0x38] sm:$0xff]
    %v479 = vld [vmem:[#allocation4 + $0x40] sm:$0xff]
    %v480 = vld [vmem:[#allocation4 + $0x48] sm:$0xff]
    %v481 = vld [vmem:[#allocation4 + $0x50] sm:$0xff]
    %v482 = vld [vmem:[#allocation4 + $0x58] sm:$0xff]
    %v483 = vld [vmem:[#allocation4 + $0x60] sm:$0xff]
    %v484 = vld [vmem:[#allocation4 + $0x68] sm:$0xff]
    %v485 = vld [vmem:[#allocation4 + $0x70] sm:$0xff]
    %v486 = vld [vmem:[#allocation4 + $0x78] sm:$0xff]
    %487 = vmatprep.subr.mxu0 0.0
    %488 = vmatpush1.msra.mxu0 %v471
    %489 = vmatprep.subr.mxu0 0.0
    %490 = vmatpush1.msra.mxu0 %v472
    %491 = vmatprep.subr.mxu0 0.0
    %492 = vmatpush1.msra.mxu0 %v473
    %493 = vmatprep.subr.mxu0 0.0
    %494 = vmatpush1.msra.mxu0 %v474
    %495 = vmatprep.subr.mxu0 0.0
    %496 = vmatpush1.msra.mxu0 %v475
    %497 = vmatprep.subr.mxu0 0.0
    %498 = vmatpush1.msra.mxu0 %v476
    %499 = vmatprep.subr.mxu0 0.0
    %500 = vmatpush1.msra.mxu0 %v477
    %501 = vmatprep.subr.mxu0 0.0
    %502 = vmatpush1.msra.mxu0 %v478
    %503 = vmatprep.subr.mxu0 0.0
    %504 = vmatpush1.msra.mxu0 %v479
    %505 = vmatprep.subr.mxu0 0.0
    %506 = vmatpush1.msra.mxu0 %v480
    %507 = vmatprep.subr.mxu0 0.0
    %508 = vmatpush1.msra.mxu0 %v481
    %509 = vmatprep.subr.mxu0 0.0
    %510 = vmatpush1.msra.mxu0 %v482
    %511 = vmatprep.subr.mxu0 0.0
    %512 = vmatpush1.msra.mxu0 %v483
    %513 = vmatprep.subr.mxu0 0.0
    %514 = vmatpush1.msra.mxu0 %v484
    %515 = vmatprep.subr.mxu0 0.0
    %516 = vmatpush1.msra.mxu0 %v485
    %517 = vmatprep.subr.mxu0 0.0
    %518 = vmatpush1.msra.mxu0 %v486
    %519 = vmatprep.subr.mxu0 0.0
    %520 = vmatpush1.msra.mxu0 0.0
    %521 = vmatprep.subr.mxu0 0.0
    %522 = vmatpush1.msra.mxu0 0.0
    %523 = vmatprep.subr.mxu0 0.0
    %524 = vmatpush1.msra.mxu0 0.0
    %525 = vmatprep.subr.mxu0 0.0
    %526 = vmatpush1.msra.mxu0 0.0
    %527 = vmatprep.subr.mxu0 0.0
    %528 = vmatpush1.msra.mxu0 0.0
    %529 = vmatprep.subr.mxu0 0.0
    %530 = vmatpush1.msra.mxu0 0.0
    %531 = vmatprep.subr.mxu0 0.0
    %532 = vmatpush1.msra.mxu0 0.0
    %533 = vmatprep.subr.mxu0 0.0
    %534 = vmatpush1.msra.mxu0 0.0
    %535 = vmatprep.subr.mxu0 0.0
    %536 = vmatpush1.msra.mxu0 0.0
    %537 = vmatprep.subr.mxu0 0.0
    %538 = vmatpush1.msra.mxu0 0.0
    %539 = vmatprep.subr.mxu0 0.0
    %540 = vmatpush1.msra.mxu0 0.0
    %541 = vmatprep.subr.mxu0 0.0
    %542 = vmatpush1.msra.mxu0 0.0
    %543 = vmatprep.subr.mxu0 0.0
    %544 = vmatpush1.msra.mxu0 0.0
    %545 = vmatprep.subr.mxu0 0.0
    %546 = vmatpush1.msra.mxu0 0.0
    %547 = vmatprep.subr.mxu0 0.0
    %548 = vmatpush1.msra.mxu0 0.0
    %549 = vmatprep.subr.mxu0 0.0
    %550 = vmatpush1.msra.mxu0 0.0
    %551 = vmatprep.mubr.f32.mxu0 0.0
    %552 = vmatmul.mubr.f32.gmra.mrb[0].mxu0 %v470
    %v553 = vpop.f32.mrb[0].mxu0
    %v554 = vadd.f32 0.0, %v553
    %v555 = vpop.f32.mrb[0].mxu0
    %556 = vdwg.mxu0
    %v557 = vadd.f32 %v469, %v554
    %v558 = vtanh.pop %v557
    %559 = vst [vmem:[#allocation3] sm:$0xff] %v558
    %s560 = scalar_lea.vmem [#allocation7], 24
    %561 = vst [vmem:[%s560] sm:$0xff] %v558
    %s562 = scalar_lea.vmem [#allocation2], 32
    %v563 = vld [vmem:[%s562] sm:$0xff]
    %v564 = vld [vmem:[#allocation3] sm:$0xff]
    %v565 = vld [vmem:[#allocation4] sm:$0xff]
    %v566 = vld [vmem:[#allocation4 + $0x8] sm:$0xff]
    %v567 = vld [vmem:[#allocation4 + $0x10] sm:$0xff]
    %v568 = vld [vmem:[#allocation4 + $0x18] sm:$0xff]
    %v569 = vld [vmem:[#allocation4 + $0x20] sm:$0xff]
    %v570 = vld [vmem:[#allocation4 + $0x28] sm:$0xff]
    %v571 = vld [vmem:[#allocation4 + $0x30] sm:$0xff]
    %v572 = vld [vmem:[#allocation4 + $0x38] sm:$0xff]
    %v573 = vld [vmem:[#allocation4 + $0x40] sm:$0xff]
    %v574 = vld [vmem:[#allocation4 + $0x48] sm:$0xff]
    %v575 = vld [vmem:[#allocation4 + $0x50] sm:$0xff]
    %v576 = vld [vmem:[#allocation4 + $0x58] sm:$0xff]
    %v577 = vld [vmem:[#allocation4 + $0x60] sm:$0xff]
    %v578 = vld [vmem:[#allocation4 + $0x68] sm:$0xff]
    %v579 = vld [vmem:[#allocation4 + $0x70] sm:$0xff]
    %v580 = vld [vmem:[#allocation4 + $0x78] sm:$0xff]
    %581 = vmatprep.subr.mxu0 0.0
    %582 = vmatpush1.msra.mxu0 %v565
    %583 = vmatprep.subr.mxu0 0.0
    %584 = vmatpush1.msra.mxu0 %v566
    %585 = vmatprep.subr.mxu0 0.0
    %586 = vmatpush1.msra.mxu0 %v567
    %587 = vmatprep.subr.mxu0 0.0
    %588 = vmatpush1.msra.mxu0 %v568
    %589 = vmatprep.subr.mxu0 0.0
    %590 = vmatpush1.msra.mxu0 %v569
    %591 = vmatprep.subr.mxu0 0.0
    %592 = vmatpush1.msra.mxu0 %v570
    %593 = vmatprep.subr.mxu0 0.0
    %594 = vmatpush1.msra.mxu0 %v571
    %595 = vmatprep.subr.mxu0 0.0
    %596 = vmatpush1.msra.mxu0 %v572
    %597 = vmatprep.subr.mxu0 0.0
    %598 = vmatpush1.msra.mxu0 %v573
    %599 = vmatprep.subr.mxu0 0.0
    %600 = vmatpush1.msra.mxu0 %v574
    %601 = vmatprep.subr.mxu0 0.0
    %602 = vmatpush1.msra.mxu0 %v575
    %603 = vmatprep.subr.mxu0 0.0
    %604 = vmatpush1.msra.mxu0 %v576
    %605 = vmatprep.subr.mxu0 0.0
    %606 = vmatpush1.msra.mxu0 %v577
    %607 = vmatprep.subr.mxu0 0.0
    %608 = vmatpush1.msra.mxu0 %v578
    %609 = vmatprep.subr.mxu0 0.0
    %610 = vmatpush1.msra.mxu0 %v579
    %611 = vmatprep.subr.mxu0 0.0
    %612 = vmatpush1.msra.mxu0 %v580
    %613 = vmatprep.subr.mxu0 0.0
    %614 = vmatpush1.msra.mxu0 0.0
    %615 = vmatprep.subr.mxu0 0.0
    %616 = vmatpush1.msra.mxu0 0.0
    %617 = vmatprep.subr.mxu0 0.0
    %618 = vmatpush1.msra.mxu0 0.0
    %619 = vmatprep.subr.mxu0 0.0
    %620 = vmatpush1.msra.mxu0 0.0
    %621 = vmatprep.subr.mxu0 0.0
    %622 = vmatpush1.msra.mxu0 0.0
    %623 = vmatprep.subr.mxu0 0.0
    %624 = vmatpush1.msra.mxu0 0.0
    %625 = vmatprep.subr.mxu0 0.0
    %626 = vmatpush1.msra.mxu0 0.0
    %627 = vmatprep.subr.mxu0 0.0
    %628 = vmatpush1.msra.mxu0 0.0
    %629 = vmatprep.subr.mxu0 0.0
    %630 = vmatpush1.msra.mxu0 0.0
    %631 = vmatprep.subr.mxu0 0.0
    %632 = vmatpush1.msra.mxu0 0.0
    %633 = vmatprep.subr.mxu0 0.0
    %634 = vmatpush1.msra.mxu0 0.0
    %635 = vmatprep.subr.mxu0 0.0
    %636 = vmatpush1.msra.mxu0 0.0
    %637 = vmatprep.subr.mxu0 0.0
    %638 = vmatpush1.msra.mxu0 0.0
    %639 = vmatprep.subr.mxu0 0.0
    %640 = vmatpush1.msra.mxu0 0.0
    %641 = vmatprep.subr.mxu0 0.0
    %642 = vmatpush1.msra.mxu0 0.0
    %643 = vmatprep.subr.mxu0 0.0
    %644 = vmatpush1.msra.mxu0 0.0
    %645 = vmatprep.mubr.f32.mxu0 0.0
    %646 = vmatmul.mubr.f32.gmra.mrb[0].mxu0 %v564
    %v647 = vpop.f32.mrb[0].mxu0
    %v648 = vadd.f32 0.0, %v647
    %v649 = vpop.f32.mrb[0].mxu0
    %650 = vdwg.mxu0
    %v651 = vadd.f32 %v563, %v648
    %v652 = vtanh.pop %v651
    %653 = vst [vmem:[#allocation3] sm:$0xff] %v652
    %s654 = scalar_lea.vmem [#allocation7], 32
    %655 = vst [vmem:[%s654] sm:$0xff] %v652
    %s656 = scalar_lea.vmem [#allocation2], 40
    %v657 = vld [vmem:[%s656] sm:$0xff]
    %v658 = vld [vmem:[#allocation3] sm:$0xff]
    %v659 = vld [vmem:[#allocation4] sm:$0xff]
    %v660 = vld [vmem:[#allocation4 + $0x8] sm:$0xff]
    %v661 = vld [vmem:[#allocation4 + $0x10] sm:$0xff]
    %v662 = vld [vmem:[#allocation4 + $0x18] sm:$0xff]
    %v663 = vld [vmem:[#allocation4 + $0x20] sm:$0xff]
    %v664 = vld [vmem:[#allocation4 + $0x28] sm:$0xff]
    %v665 = vld [vmem:[#allocation4 + $0x30] sm:$0xff]
    %v666 = vld [vmem:[#allocation4 + $0x38] sm:$0xff]
    %v667 = vld [vmem:[#allocation4 + $0x40] sm:$0xff]
    %v668 = vld [vmem:[#allocation4 + $0x48] sm:$0xff]
    %v669 = vld [vmem:[#allocation4 + $0x50] sm:$0xff]
    %v670 = vld [vmem:[#allocation4 + $0x58] sm:$0xff]
    %v671 = vld [vmem:[#allocation4 + $0x60] sm:$0xff]
    %v672 = vld [vmem:[#allocation4 + $0x68] sm:$0xff]
    %v673 = vld [vmem:[#allocation4 + $0x70] sm:$0xff]
    %v674 = vld [vmem:[#allocation4 + $0x78] sm:$0xff]
    %675 = vmatprep.subr.mxu0 0.0
    %676 = vmatpush1.msra.mxu0 %v659
    %677 = vmatprep.subr.mxu0 0.0
    %678 = vmatpush1.msra.mxu0 %v660
    %679 = vmatprep.subr.mxu0 0.0
    %680 = vmatpush1.msra.mxu0 %v661
    %681 = vmatprep.subr.mxu0 0.0
    %682 = vmatpush1.msra.mxu0 %v662
    %683 = vmatprep.subr.mxu0 0.0
    %684 = vmatpush1.msra.mxu0 %v663
    %685 = vmatprep.subr.mxu0 0.0
    %686 = vmatpush1.msra.mxu0 %v664
    %687 = vmatprep.subr.mxu0 0.0
    %688 = vmatpush1.msra.mxu0 %v665
    %689 = vmatprep.subr.mxu0 0.0
    %690 = vmatpush1.msra.mxu0 %v666
    %691 = vmatprep.subr.mxu0 0.0
    %692 = vmatpush1.msra.mxu0 %v667
    %693 = vmatprep.subr.mxu0 0.0
    %694 = vmatpush1.msra.mxu0 %v668
    %695 = vmatprep.subr.mxu0 0.0
    %696 = vmatpush1.msra.mxu0 %v669
    %697 = vmatprep.subr.mxu0 0.0
    %698 = vmatpush1.msra.mxu0 %v670
    %699 = vmatprep.subr.mxu0 0.0
    %700 = vmatpush1.msra.mxu0 %v671
    %701 = vmatprep.subr.mxu0 0.0
    %702 = vmatpush1.msra.mxu0 %v672
    %703 = vmatprep.subr.mxu0 0.0
    %704 = vmatpush1.msra.mxu0 %v673
    %705 = vmatprep.subr.mxu0 0.0
    %706 = vmatpush1.msra.mxu0 %v674
    %707 = vmatprep.subr.mxu0 0.0
    %708 = vmatpush1.msra.mxu0 0.0
    %709 = vmatprep.subr.mxu0 0.0
    %710 = vmatpush1.msra.mxu0 0.0
    %711 = vmatprep.subr.mxu0 0.0
    %712 = vmatpush1.msra.mxu0 0.0
    %713 = vmatprep.subr.mxu0 0.0
    %714 = vmatpush1.msra.mxu0 0.0
    %715 = vmatprep.subr.mxu0 0.0
    %716 = vmatpush1.msra.mxu0 0.0
    %717 = vmatprep.subr.mxu0 0.0
    %718 = vmatpush1.msra.mxu0 0.0
    %719 = vmatprep.subr.mxu0 0.0
    %720 = vmatpush1.msra.mxu0 0.0
    %721 = vmatprep.subr.mxu0 0.0
    %722 = vmatpush1.msra.mxu0 0.0
    %723 = vmatprep.subr.mxu0 0.0
    %724 = vmatpush1.msra.mxu0 0.0
    %725 = vmatprep.subr.mxu0 0.0
    %726 = vmatpush1.msra.mxu0 0.0
    %727 = vmatprep.subr.mxu0 0.0
    %728 = vmatpush1.msra.mxu0 0.0
    %729 = vmatprep.subr.mxu0 0.0
    %730 = vmatpush1.msra.mxu0 0.0
    %731 = vmatprep.subr.mxu0 0.0
    %732 = vmatpush1.msra.mxu0 0.0
    %733 = vmatprep.subr.mxu0 0.0
    %734 = vmatpush1.msra.mxu0 0.0
    %735 = vmatprep.subr.mxu0 0.0
    %736 = vmatpush1.msra.mxu0 0.0
    %737 = vmatprep.subr.mxu0 0.0
    %738 = vmatpush1.msra.mxu0 0.0
    %739 = vmatprep.mubr.f32.mxu0 0.0
    %740 = vmatmul.mubr.f32.gmra.mrb[0].mxu0 %v658
    %v741 = vpop.f32.mrb[0].mxu0
    %v742 = vadd.f32 0.0, %v741
    %v743 = vpop.f32.mrb[0].mxu0
    %744 = vdwg.mxu0
    %v745 = vadd.f32 %v657, %v742
    %v746 = vtanh.pop %v745
    %747 = vst [vmem:[#allocation3] sm:$0xff] %v746
    %s748 = scalar_lea.vmem [#allocation7], 40
    %749 = vst [vmem:[%s748] sm:$0xff] %v746
    %s750 = scalar_lea.vmem [#allocation2], 48
    %v751 = vld [vmem:[%s750] sm:$0xff]
    %v752 = vld [vmem:[#allocation3] sm:$0xff]
    %v753 = vld [vmem:[#allocation4] sm:$0xff]
    %v754 = vld [vmem:[#allocation4 + $0x8] sm:$0xff]
    %v755 = vld [vmem:[#allocation4 + $0x10] sm:$0xff]
    %v756 = vld [vmem:[#allocation4 + $0x18] sm:$0xff]
    %v757 = vld [vmem:[#allocation4 + $0x20] sm:$0xff]
    %v758 = vld [vmem:[#allocation4 + $0x28] sm:$0xff]
    %v759 = vld [vmem:[#allocation4 + $0x30] sm:$0xff]
    %v760 = vld [vmem:[#allocation4 + $0x38] sm:$0xff]
    %v761 = vld [vmem:[#allocation4 + $0x40] sm:$0xff]
    %v762 = vld [vmem:[#allocation4 + $0x48] sm:$0xff]
    %v763 = vld [vmem:[#allocation4 + $0x50] sm:$0xff]
    %v764 = vld [vmem:[#allocation4 + $0x58] sm:$0xff]
    %v765 = vld [vmem:[#allocation4 + $0x60] sm:$0xff]
    %v766 = vld [vmem:[#allocation4 + $0x68] sm:$0xff]
    %v767 = vld [vmem:[#allocation4 + $0x70] sm:$0xff]
    %v768 = vld [vmem:[#allocation4 + $0x78] sm:$0xff]
    %769 = vmatprep.subr.mxu0 0.0
    %770 = vmatpush1.msra.mxu0 %v753
    %771 = vmatprep.subr.mxu0 0.0
    %772 = vmatpush1.msra.mxu0 %v754
    %773 = vmatprep.subr.mxu0 0.0
    %774 = vmatpush1.msra.mxu0 %v755
    %775 = vmatprep.subr.mxu0 0.0
    %776 = vmatpush1.msra.mxu0 %v756
    %777 = vmatprep.subr.mxu0 0.0
    %778 = vmatpush1.msra.mxu0 %v757
    %779 = vmatprep.subr.mxu0 0.0
    %780 = vmatpush1.msra.mxu0 %v758
    %781 = vmatprep.subr.mxu0 0.0
    %782 = vmatpush1.msra.mxu0 %v759
    %783 = vmatprep.subr.mxu0 0.0
    %784 = vmatpush1.msra.mxu0 %v760
    %785 = vmatprep.subr.mxu0 0.0
    %786 = vmatpush1.msra.mxu0 %v761
    %787 = vmatprep.subr.mxu0 0.0
    %788 = vmatpush1.msra.mxu0 %v762
    %789 = vmatprep.subr.mxu0 0.0
    %790 = vmatpush1.msra.mxu0 %v763
    %791 = vmatprep.subr.mxu0 0.0
    %792 = vmatpush1.msra.mxu0 %v764
    %793 = vmatprep.subr.mxu0 0.0
    %794 = vmatpush1.msra.mxu0 %v765
    %795 = vmatprep.subr.mxu0 0.0
    %796 = vmatpush1.msra.mxu0 %v766
    %797 = vmatprep.subr.mxu0 0.0
    %798 = vmatpush1.msra.mxu0 %v767
    %799 = vmatprep.subr.mxu0 0.0
    %800 = vmatpush1.msra.mxu0 %v768
    %801 = vmatprep.subr.mxu0 0.0
    %802 = vmatpush1.msra.mxu0 0.0
    %803 = vmatprep.subr.mxu0 0.0
    %804 = vmatpush1.msra.mxu0 0.0
    %805 = vmatprep.subr.mxu0 0.0
    %806 = vmatpush1.msra.mxu0 0.0
    %807 = vmatprep.subr.mxu0 0.0
    %808 = vmatpush1.msra.mxu0 0.0
    %809 = vmatprep.subr.mxu0 0.0
    %810 = vmatpush1.msra.mxu0 0.0
    %811 = vmatprep.subr.mxu0 0.0
    %812 = vmatpush1.msra.mxu0 0.0
    %813 = vmatprep.subr.mxu0 0.0
    %814 = vmatpush1.msra.mxu0 0.0
    %815 = vmatprep.subr.mxu0 0.0
    %816 = vmatpush1.msra.mxu0 0.0
    %817 = vmatprep.subr.mxu0 0.0
    %818 = vmatpush1.msra.mxu0 0.0
    %819 = vmatprep.subr.mxu0 0.0
    %820 = vmatpush1.msra.mxu0 0.0
    %821 = vmatprep.subr.mxu0 0.0
    %822 = vmatpush1.msra.mxu0 0.0
    %823 = vmatprep.subr.mxu0 0.0
    %824 = vmatpush1.msra.mxu0 0.0
    %825 = vmatprep.subr.mxu0 0.0
    %826 = vmatpush1.msra.mxu0 0.0
    %827 = vmatprep.subr.mxu0 0.0
    %828 = vmatpush1.msra.mxu0 0.0
    %829 = vmatprep.subr.mxu0 0.0
    %830 = vmatpush1.msra.mxu0 0.0
    %831 = vmatprep.subr.mxu0 0.0
    %832 = vmatpush1.msra.mxu0 0.0
    %833 = vmatprep.mubr.f32.mxu0 0.0
    %834 = vmatmul.mubr.f32.gmra.mrb[0].mxu0 %v752
    %v835 = vpop.f32.mrb[0].mxu0
    %v836 = vadd.f32 0.0, %v835
    %v837 = vpop.f32.mrb[0].mxu0
    %838 = vdwg.mxu0
    %v839 = vadd.f32 %v751, %v836
    %v840 = vtanh.pop %v839
    %841 = vst [vmem:[#allocation3] sm:$0xff] %v840
    %s842 = scalar_lea.vmem [#allocation7], 48
    %843 = vst [vmem:[%s842] sm:$0xff] %v840
    %s844 = scalar_lea.vmem [#allocation2], 56
    %v845 = vld [vmem:[%s844] sm:$0xff]
    %v846 = vld [vmem:[#allocation3] sm:$0xff]
    %v847 = vld [vmem:[#allocation4] sm:$0xff]
    %v848 = vld [vmem:[#allocation4 + $0x8] sm:$0xff]
    %v849 = vld [vmem:[#allocation4 + $0x10] sm:$0xff]
    %v850 = vld [vmem:[#allocation4 + $0x18] sm:$0xff]
    %v851 = vld [vmem:[#allocation4 + $0x20] sm:$0xff]
    %v852 = vld [vmem:[#allocation4 + $0x28] sm:$0xff]
    %v853 = vld [vmem:[#allocation4 + $0x30] sm:$0xff]
    %v854 = vld [vmem:[#allocation4 + $0x38] sm:$0xff]
    %v855 = vld [vmem:[#allocation4 + $0x40] sm:$0xff]
    %v856 = vld [vmem:[#allocation4 + $0x48] sm:$0xff]
    %v857 = vld [vmem:[#allocation4 + $0x50] sm:$0xff]
    %v858 = vld [vmem:[#allocation4 + $0x58] sm:$0xff]
    %v859 = vld [vmem:[#allocation4 + $0x60] sm:$0xff]
    %v860 = vld [vmem:[#allocation4 + $0x68] sm:$0xff]
    %v861 = vld [vmem:[#allocation4 + $0x70] sm:$0xff]
    %v862 = vld [vmem:[#allocation4 + $0x78] sm:$0xff]
    %863 = vmatprep.subr.mxu0 0.0
    %864 = vmatpush1.msra.mxu0 %v847
    %865 = vmatprep.subr.mxu0 0.0
    %866 = vmatpush1.msra.mxu0 %v848
    %867 = vmatprep.subr.mxu0 0.0
    %868 = vmatpush1.msra.mxu0 %v849
    %869 = vmatprep.subr.mxu0 0.0
    %870 = vmatpush1.msra.mxu0 %v850
    %871 = vmatprep.subr.mxu0 0.0
    %872 = vmatpush1.msra.mxu0 %v851
    %873 = vmatprep.subr.mxu0 0.0
    %874 = vmatpush1.msra.mxu0 %v852
    %875 = vmatprep.subr.mxu0 0.0
    %876 = vmatpush1.msra.mxu0 %v853
    %877 = vmatprep.subr.mxu0 0.0
    %878 = vmatpush1.msra.mxu0 %v854
    %879 = vmatprep.subr.mxu0 0.0
    %880 = vmatpush1.msra.mxu0 %v855
    %881 = vmatprep.subr.mxu0 0.0
    %882 = vmatpush1.msra.mxu0 %v856
    %883 = vmatprep.subr.mxu0 0.0
    %884 = vmatpush1.msra.mxu0 %v857
    %885 = vmatprep.subr.mxu0 0.0
    %886 = vmatpush1.msra.mxu0 %v858
    %887 = vmatprep.subr.mxu0 0.0
    %888 = vmatpush1.msra.mxu0 %v859
    %889 = vmatprep.subr.mxu0 0.0
    %890 = vmatpush1.msra.mxu0 %v860
    %891 = vmatprep.subr.mxu0 0.0
    %892 = vmatpush1.msra.mxu0 %v861
    %893 = vmatprep.subr.mxu0 0.0
    %894 = vmatpush1.msra.mxu0 %v862
    %895 = vmatprep.subr.mxu0 0.0
    %896 = vmatpush1.msra.mxu0 0.0
    %897 = vmatprep.subr.mxu0 0.0
    %898 = vmatpush1.msra.mxu0 0.0
    %899 = vmatprep.subr.mxu0 0.0
    %900 = vmatpush1.msra.mxu0 0.0
    %901 = vmatprep.subr.mxu0 0.0
    %902 = vmatpush1.msra.mxu0 0.0
    %903 = vmatprep.subr.mxu0 0.0
    %904 = vmatpush1.msra.mxu0 0.0
    %905 = vmatprep.subr.mxu0 0.0
    %906 = vmatpush1.msra.mxu0 0.0
    %907 = vmatprep.subr.mxu0 0.0
    %908 = vmatpush1.msra.mxu0 0.0
    %909 = vmatprep.subr.mxu0 0.0
    %910 = vmatpush1.msra.mxu0 0.0
    %911 = vmatprep.subr.mxu0 0.0
    %912 = vmatpush1.msra.mxu0 0.0
    %913 = vmatprep.subr.mxu0 0.0
    %914 = vmatpush1.msra.mxu0 0.0
    %915 = vmatprep.subr.mxu0 0.0
    %916 = vmatpush1.msra.mxu0 0.0
    %917 = vmatprep.subr.mxu0 0.0
    %918 = vmatpush1.msra.mxu0 0.0
    %919 = vmatprep.subr.mxu0 0.0
    %920 = vmatpush1.msra.mxu0 0.0
    %921 = vmatprep.subr.mxu0 0.0
    %922 = vmatpush1.msra.mxu0 0.0
    %923 = vmatprep.subr.mxu0 0.0
    %924 = vmatpush1.msra.mxu0 0.0
    %925 = vmatprep.subr.mxu0 0.0
    %926 = vmatpush1.msra.mxu0 0.0
    %927 = vmatprep.mubr.f32.mxu0 0.0
    %928 = vmatmul.mubr.f32.gmra.mrb[0].mxu0 %v846
    %v929 = vpop.f32.mrb[0].mxu0
    %v930 = vadd.f32 0.0, %v929
    %v931 = vpop.f32.mrb[0].mxu0
    %932 = vdwg.mxu0
    %v933 = vadd.f32 %v845, %v930
    %v934 = vtanh.pop %v933
    %935 = vst [vmem:[#allocation3] sm:$0xff] %v934
    %s936 = scalar_lea.vmem [#allocation7], 56
    %937 = vst [vmem:[%s936] sm:$0xff] %v934
    // Predicated region
    $region22: #{tpu_custom_call.1} parent=1 // pred_check
      _
    $region23: #{tpu_custom_call.1} parent=1 // pred_check_branch
      %939 = sbr.rel (0) target = $region25
    $region24: #{tpu_custom_call.1} parent=1 // pred_region
      %s941 = ssub.s32 1024, 1024
      %942 = vsyncadd [#allocation6], %s941
      %s943 = sshll.u32 [#allocation7], 4
      %s944 = int_to_ptr.vmem [resolvable:$true] %s943
      %949 = dma.vmem_to_hbm [thread:$0]  %s944, 1024, %s4, [#allocation6], 128, 128, 8
    $region25: #{tpu_custom_call.1} parent=1 // pred_fallthru
      _
    // Predicated region
    $region26: #{tpu_custom_call.1} parent=1 // pred_check
      _
    $region27: #{tpu_custom_call.1} parent=1 // pred_check_branch
      %951 = sbr.rel (0) target = $region29
    $region28: #{tpu_custom_call.1} parent=1 // pred_region
      %952 = dma.done [#allocation6], 1024
    $region29: #{tpu_custom_call.1} parent=1 // pred_fallthru
      _
    %953 = vsyncpa [#allocation5], 1
    %954 = vsyncpa [#allocation6], 1

</llo_original>
